<compile_context>
chip_gen: v5e
topology: v5e:2x2
jax: 0.10.0
libtpu: 0.0.40
codegen_flags: <defaults>
</compile_context>

<pallas_src>
import functools
import math

import jax
import jax.numpy as jnp
from jax.experimental import pallas as pl
from jax.experimental.pallas import tpu as pltpu

EPS = 1e-7
_LANES = 128
_SUBLANES = 8
_TILE_BYTES = 2 * 1024 * 1024     # per-input streaming tile (HBM-bound op)
_VMEM_LIMIT = 32 * 1024 * 1024    # explicit scoped-VMEM limit (safe on v5e..v7x)


def _dice_partial_kernel(x_ref, t_ref, inter_ref, card_ref, *,
                         rows_per_block, num_chunks, tail_rows, fold):
    """Grid = (N, num_chunks); each step emits one lane-dense partial block.

    x_ref, t_ref : (1, rows_per_block, 128) streaming input tiles
    inter_ref    : (1, acc_rows, 128) partial of sum(x * t) for this chunk
    card_ref     : (1, acc_rows, 128) partial of sum(x + t) for this chunk
    """
    x = x_ref[0].astype(jnp.float32)      # (rows_per_block, 128)
    t = t_ref[0].astype(jnp.float32)

    def _store(xv, tv):
        prod = xv * tv
        card = xv + tv
        if fold:
            # Fold sublane groups with pure VPU adds -> one vreg-wide partial.
            prod = prod.reshape(-1, _SUBLANES, _LANES).sum(axis=0)
            card = card.reshape(-1, _SUBLANES, _LANES).sum(axis=0)
        inter_ref[...] = prod[None]
        card_ref[...] = card[None]

    if tail_rows == rows_per_block:
        # Every chunk is full: minimal VPU path on every step.
        _store(x, t)
    else:
        j = pl.program_id(1)

        @pl.when(j < num_chunks - 1)
        def _():
            _store(x, t)

        @pl.when(j == num_chunks - 1)
        def _():
            # Ragged trailing chunk: out-of-bounds auto-DMA rows hold
            # unspecified data, so zero them before reducing (where is a
            # select, so even NaN garbage cannot leak into the sums).
            row = jax.lax.broadcasted_iota(jnp.int32, (rows_per_block, 1), 0)
            valid = row < tail_rows
            _store(jnp.where(valid, x, 0.0), jnp.where(valid, t, 0.0))


@jax.jit
def dice_loss_normal2(x, target):
    """x, target: (N, C, D, H, W). Returns scalar f32 loss mean(1 - dice)."""
    assert x.shape == target.shape
    n = x.shape[0]
    feat = math.prod(x.shape[1:])

    # Flatten per-sample features (free reshape, no HBM copy).
    xf = jnp.reshape(x, (n, feat))
    tf = jnp.reshape(target, (n, feat))

    # Lane-align the feature axis.  No-op (no copy) when feat % 128 == 0.
    feat_pad = -(-feat // _LANES) * _LANES
    if feat_pad != feat:
        # TODO(synk): rare ragged-lane case (feat % 128 != 0) still takes a
        # padded-copy path; zero padding is exact for both the x*t and x+t sums.
        pad = ((0, 0), (0, feat_pad - feat))
        xf = jnp.pad(xf, pad)
        tf = jnp.pad(tf, pad)
    rows = feat_pad // _LANES

    xf = jnp.reshape(xf, (n, rows, _LANES))
    tf = jnp.reshape(tf, (n, rows, _LANES))

    # Byte-budgeted, dtype-aware streaming tile (~2 MiB per input per step):
    # 4096 rows for f32, 8192 rows for bf16.  (8,128)-legal because the block
    # row count is either a multiple of 8 or equal to the full row extent.
    itemsize = jnp.dtype(x.dtype).itemsize
    budget_rows = max(_SUBLANES,
                      (_TILE_BYTES // (_LANES * itemsize)) // _SUBLANES * _SUBLANES)
    rows_per_block = rows if rows <= budget_rows else budget_rows
    num_chunks = -(-rows // rows_per_block)
    tail_rows = rows - (num_chunks - 1) * rows_per_block
    fold = (rows_per_block % _SUBLANES) == 0
    acc_rows = _SUBLANES if fold else rows_per_block

    kernel = functools.partial(
        _dice_partial_kernel,
        rows_per_block=rows_per_block,
        num_chunks=num_chunks,
        tail_rows=tail_rows,
        fold=fold,
    )

    block = (1, rows_per_block, _LANES)
    out_block = (1, acc_rows, _LANES)
    out_rows = n * num_chunks

    inter, card = pl.pallas_call(
        kernel,
        out_shape=(
            jax.ShapeDtypeStruct((out_rows, acc_rows, _LANES), jnp.float32),
            jax.ShapeDtypeStruct((out_rows, acc_rows, _LANES), jnp.float32),
        ),
        grid_spec=pltpu.PrefetchScalarGridSpec(
            num_scalar_prefetch=0,
            grid=(n, num_chunks),
            in_specs=[
                pl.BlockSpec(block, lambda i, j: (i, j, 0)),
                pl.BlockSpec(block, lambda i, j: (i, j, 0)),
            ],
            out_specs=[
                pl.BlockSpec(out_block, lambda i, j: (i * num_chunks + j, 0, 0)),
                pl.BlockSpec(out_block, lambda i, j: (i * num_chunks + j, 0, 0)),
            ],
        ),
        compiler_params=pltpu.CompilerParams(
            # No carried state -> every grid point is independent; both axes
            # parallel so v7x megacore is balanced for any N (chunk axis).
            dimension_semantics=("parallel", "parallel"),
            vmem_limit_bytes=_VMEM_LIMIT,
        ),
    )(xf, tf)

    # Tiny JAX epilogue: finish the per-sample reductions + dice + mean.
    intersection = jnp.sum(jnp.reshape(inter, (n, -1)), axis=1)
    cardinality = jnp.sum(jnp.reshape(card, (n, -1)), axis=1)
    dice = 2.0 * intersection / (cardinality + EPS)
    return jnp.mean(1.0 - dice)


def _reference(x, target):
    dims = (1, 2, 3, 4)
    x = x.astype(jnp.float32)
    target = target.astype(jnp.float32)
    intersection = jnp.sum(x * target, axis=dims)
    cardinality = jnp.sum(x + target, axis=dims)
    dice = 2.0 * intersection / (cardinality + EPS)
    return jnp.mean(1.0 - dice)


if __name__ == "__main__":
    key = jax.random.PRNGKey(0)

    def _check(idx, shape, dtype=jnp.float32, tol=1e-5):
        kx, kt = jax.random.split(jax.random.fold_in(key, idx))
        xs = jax.random.uniform(kx, shape, dtype=jnp.float32).astype(dtype)
        ts = (jax.random.uniform(kt, shape, dtype=jnp.float32) > 0.5).astype(dtype)
        loss = jax.block_until_ready(dice_loss_normal2(xs, ts))
        ref = _reference(xs, ts)
        assert jnp.allclose(loss, ref, atol=tol, rtol=tol), (shape, dtype, loss, ref)

    _check(0, (2, 3, 4, 8, 8))        # tiny: single chunk, non-folded partial
    _check(1, (1, 4, 8, 32, 32))      # batch of 1, single folded chunk
    _check(2, (2, 4, 34, 64, 64))     # rows=4352 -> 2 chunks, ragged last chunk
    _check(3, (2, 17, 16, 32, 32))    # rows=2176 -> single chunk, folded
    _check(4, (2, 4, 32, 64, 64), dtype=jnp.bfloat16, tol=1e-4)  # bf16 tile sizing
    print("KERNEL_OK")
</pallas_src>

<mosaic_0001>
module attributes {stable_mosaic.version = 11 : i64} {
  func.func @_dice_partial_kernel(%arg0: i32, %arg1: i32, %arg2: memref<1x6x128xf32, #tpu.memory_space<vmem>>, %arg3: memref<1x6x128xf32, #tpu.memory_space<vmem>>, %arg4: memref<1x6x128xf32, #tpu.memory_space<vmem>>, %arg5: memref<1x6x128xf32, #tpu.memory_space<vmem>>) attributes {dimension_semantics = [#tpu.dimension_semantics<parallel>, #tpu.dimension_semantics<parallel>], iteration_bounds = array<i64: 2, 1>, scalar_prefetch = 0 : i64, scratch_operands = 0 : i64, tpu.core_type = #tpu.core_type<tc>, window_params = [{transform_indices = @transform_0, window_bounds = array<i64: 1, 6, 128>}, {transform_indices = @transform_1, window_bounds = array<i64: 1, 6, 128>}, {transform_indices = @transform_2, window_bounds = array<i64: 1, 6, 128>}, {transform_indices = @transform_3, window_bounds = array<i64: 1, 6, 128>}]} {
    %c0 = arith.constant 0 : index
    %c0_0 = arith.constant 0 : index
    %c0_1 = arith.constant 0 : index
    %0 = vector.load %arg2[%c0, %c0_0, %c0_1] : memref<1x6x128xf32, #tpu.memory_space<vmem>>, vector<1x6x128xf32>
    %1 = vector.shape_cast %0 : vector<1x6x128xf32> to vector<6x128xf32>
    %c0_2 = arith.constant 0 : index
    %c0_3 = arith.constant 0 : index
    %c0_4 = arith.constant 0 : index
    %2 = vector.load %arg3[%c0_2, %c0_3, %c0_4] : memref<1x6x128xf32, #tpu.memory_space<vmem>>, vector<1x6x128xf32>
    %3 = vector.shape_cast %2 : vector<1x6x128xf32> to vector<6x128xf32>
    %4 = arith.mulf %1, %3 : vector<6x128xf32>
    %5 = arith.addf %1, %3 : vector<6x128xf32>
    %6 = vector.shape_cast %4 : vector<6x128xf32> to vector<1x6x128xf32>
    %c0_5 = arith.constant 0 : index
    %c0_6 = arith.constant 0 : index
    %c0_7 = arith.constant 0 : index
    %7 = vector.load %arg4[%c0_5, %c0_6, %c0_7] : memref<1x6x128xf32, #tpu.memory_space<vmem>>, vector<1x6x128xf32>
    tpu.vector_store %arg4[%c0_5, %c0_6, %c0_7], %6 {strides = array<i32>} : memref<1x6x128xf32, #tpu.memory_space<vmem>>, vector<1x6x128xf32>,
    %8 = vector.shape_cast %5 : vector<6x128xf32> to vector<1x6x128xf32>
    %c0_8 = arith.constant 0 : index
    %c0_9 = arith.constant 0 : index
    %c0_10 = arith.constant 0 : index
    %9 = vector.load %arg5[%c0_8, %c0_9, %c0_10] : memref<1x6x128xf32, #tpu.memory_space<vmem>>, vector<1x6x128xf32>
    tpu.vector_store %arg5[%c0_8, %c0_9, %c0_10], %8 {strides = array<i32>} : memref<1x6x128xf32, #tpu.memory_space<vmem>>, vector<1x6x128xf32>,
    return
  }
  func.func @transform_0(%arg0: i32, %arg1: i32) -> (i32, i32, i32) {
    %c0_i32 = arith.constant 0 : i32
    %c0_i32_0 = arith.constant 0 : i32
    return %arg0, %arg1, %c0_i32 : i32, i32, i32
  }
  func.func @transform_1(%arg0: i32, %arg1: i32) -> (i32, i32, i32) {
    %c0_i32 = arith.constant 0 : i32
    %c0_i32_0 = arith.constant 0 : i32
    return %arg0, %arg1, %c0_i32 : i32, i32, i32
  }
  func.func @transform_2(%arg0: i32, %arg1: i32) -> (i32, i32, i32) {
    %c1_i32 = arith.constant 1 : i32
    %0 = arith.muli %arg0, %c1_i32 : i32
    %1 = arith.addi %0, %arg1 : i32
    %c0_i32 = arith.constant 0 : i32
    %c0_i32_0 = arith.constant 0 : i32
    %c0_i32_1 = arith.constant 0 : i32
    return %1, %c0_i32, %c0_i32_0 : i32, i32, i32
  }
  func.func @transform_3(%arg0: i32, %arg1: i32) -> (i32, i32, i32) {
    %c1_i32 = arith.constant 1 : i32
    %0 = arith.muli %arg0, %c1_i32 : i32
    %1 = arith.addi %0, %arg1 : i32
    %c0_i32 = arith.constant 0 : i32
    %c0_i32_0 = arith.constant 0 : i32
    %c0_i32_1 = arith.constant 0 : i32
    return %1, %c0_i32, %c0_i32_0 : i32, i32, i32
  }
}

</mosaic_0001>

<llo_original>
// kernel: dice_loss_normal2.1
$region0: #{dice_loss_normal2.1}
  #allocation0 [shape = 'u32[]', space=smem, size = 0x4, offset = 0x4, fixed_abs, tag = 'smem constant byte address 0x4 - core index']
  #allocation1 [shape = 'u32[72,128]{1,0:T(1,128)}', space=vmem, size = 0x9000, scoped, tag = 'internal scratch']
  %s0 = inlined_call_operand.vmem [shape: f32[2,6,128], index: 0, kind: input, shape index: {}]
  %s1 = inlined_call_operand.vmem [shape: f32[2,6,128], index: 1, kind: input, shape index: {}]
  %s2 = inlined_call_operand.vmem [shape: f32[2,6,128], index: 2, kind: output, shape index: {0}]
  %s3 = inlined_call_operand.vmem [shape: f32[2,6,128], index: 3, kind: output, shape index: {1}]
  %4 = xla_tuple %s2, %s3
  %s5 = sld [smem:[#allocation0]]
  $region49: #{dice_loss_normal2.1} parent=0
    _
  %s7 = ssub.s32 1, %s5
  %s8 = scalar_select 0, %s7, %s5
  loop: start=0, step=1, limit=4
  $region2: #{dice_loss_normal2.1} parent=0 // loop_pre_header
    _
  $region3: #{dice_loss_normal2.1} parent=0 // loop_header
    %s10 = sphi 0, %s14
    %p11 = scmp.ge.s32.totalorder %s10, 4
    %s17 = sphi 0, %s29
    %s18 = sphi 0, %s25
    %s19 = sphi 0, %s17
    %s20 = sphi 0, %s18
    %s21 = sphi 0, %s19
    %s22 = sphi 0, %s20
    %s34 = sphi 0, %s36
    %s37 = sphi 0, %s34
    %s38 = sphi 0, %s37
    %s54 = sphi 0, %s38
    %s62 = sphi 0, %s64
    %s65 = sphi 0, %s62
    %s66 = sphi 0, %s65
    %s82 = sphi 0, %s66
    %s90 = sphi 0, %s92
    %s93 = sphi 0, %s90
    %s94 = sphi 0, %s93
    %s110 = sphi 0, %s94
    %s118 = sphi 0, %s120
    %s121 = sphi 0, %s118
    %s122 = sphi 0, %s121
    %s138 = sphi 0, %s122
  $region4: #{dice_loss_normal2.1} parent=0 // loop_header_branch
    %13 = sbr.rel (%p11) target = $region8
  $region5: #{dice_loss_normal2.1} parent=0 // loop_body
    %s15 = ssub.s32 %s10, 1
    %s16 = ssub.s32 %s10, 2
    %s23 = sadd.s32 1, %s18
    %p24 = scmp.ge.s32.totalorder %s23, 1
    %s25 = scalar_select %p24, 0, %s23
    %s26 = sadd.s32 1, %s17
    %s27 = scalar_select %p24, %s26, %s17
    %p28 = scmp.ge.s32.totalorder %s27, 2
    %s29 = scalar_select %p28, 0, %s27
    %s30 = ssub.s32 %s17, %s29
    %s31 = ssub.s32 %s18, %s25
    %s32 = sor.u32 %s30, %s31
    %p33 = scmp.eq.s32.totalorder %s32, 0
    %s35 = sadd.s32 %s34, 1
    %s36 = scalar_select %p33, %s34, %s35
    %p39 = pneg %p33
    %p40 = scmp.eq.s32.totalorder %s10, 1
    %p41 = por %p39, %p40
    %p42 = scmp.ne.s32.totalorder %s34, %s37
    %p43 = scmp.eq.s32.totalorder %s10, 0
    %p44 = por %p42, %p43
    %p45 = scmp.ne.s32.totalorder %s34, %s37
    %p46 = scmp.eq.s32.totalorder %s15, 1
    %p47 = por %p45, %p46
    %p48 = scmp.ne.s32.totalorder %s37, %s38
    %p49 = scmp.eq.s32.totalorder %s15, 0
    %p50 = por %p48, %p49
    %p51 = scmp.ne.s32.totalorder %s37, %s38
    %p52 = scmp.eq.s32.totalorder %s16, 1
    %p53 = por %p51, %p52
    %p55 = scmp.ne.s32.totalorder %s38, %s54
    %p56 = scmp.eq.s32.totalorder %s16, 0
    %p57 = por %p55, %p56
    %s58 = ssub.s32 %s17, %s29
    %s59 = ssub.s32 %s18, %s25
    %s60 = sor.u32 %s58, %s59
    %p61 = scmp.eq.s32.totalorder %s60, 0
    %s63 = sadd.s32 %s62, 1
    %s64 = scalar_select %p61, %s62, %s63
    %p67 = pneg %p61
    %p68 = scmp.eq.s32.totalorder %s10, 1
    %p69 = por %p67, %p68
    %p70 = scmp.ne.s32.totalorder %s62, %s65
    %p71 = scmp.eq.s32.totalorder %s10, 0
    %p72 = por %p70, %p71
    %p73 = scmp.ne.s32.totalorder %s62, %s65
    %p74 = scmp.eq.s32.totalorder %s15, 1
    %p75 = por %p73, %p74
    %p76 = scmp.ne.s32.totalorder %s65, %s66
    %p77 = scmp.eq.s32.totalorder %s15, 0
    %p78 = por %p76, %p77
    %p79 = scmp.ne.s32.totalorder %s65, %s66
    %p80 = scmp.eq.s32.totalorder %s16, 1
    %p81 = por %p79, %p80
    %p83 = scmp.ne.s32.totalorder %s66, %s82
    %p84 = scmp.eq.s32.totalorder %s16, 0
    %p85 = por %p83, %p84
    %s86 = sadd.s32 %s17, %s18
    %s87 = sadd.s32 %s29, %s25
    %s88 = ssub.s32 %s86, %s87
    %p89 = scmp.eq.s32.totalorder %s88, 0
    %s91 = sadd.s32 %s90, 1
    %s92 = scalar_select %p89, %s90, %s91
    %p95 = pneg %p89
    %p96 = scmp.eq.s32.totalorder %s10, 1
    %p97 = por %p95, %p96
    %p98 = scmp.ne.s32.totalorder %s90, %s93
    %p99 = scmp.eq.s32.totalorder %s10, 0
    %p100 = por %p98, %p99
    %p101 = scmp.ne.s32.totalorder %s90, %s93
    %p102 = scmp.eq.s32.totalorder %s15, 1
    %p103 = por %p101, %p102
    %p104 = scmp.ne.s32.totalorder %s93, %s94
    %p105 = scmp.eq.s32.totalorder %s15, 0
    %p106 = por %p104, %p105
    %p107 = scmp.ne.s32.totalorder %s93, %s94
    %p108 = scmp.eq.s32.totalorder %s16, 1
    %p109 = por %p107, %p108
    %p111 = scmp.ne.s32.totalorder %s94, %s110
    %p112 = scmp.eq.s32.totalorder %s16, 0
    %p113 = por %p111, %p112
    %s114 = sadd.s32 %s17, %s18
    %s115 = sadd.s32 %s29, %s25
    %s116 = ssub.s32 %s114, %s115
    %p117 = scmp.eq.s32.totalorder %s116, 0
    %s119 = sadd.s32 %s118, 1
    %s120 = scalar_select %p117, %s118, %s119
    %p123 = pneg %p117
    %p124 = scmp.eq.s32.totalorder %s10, 1
    %p125 = por %p123, %p124
    %p126 = scmp.ne.s32.totalorder %s118, %s121
    %p127 = scmp.eq.s32.totalorder %s10, 0
    %p128 = por %p126, %p127
    %p129 = scmp.ne.s32.totalorder %s118, %s121
    %p130 = scmp.eq.s32.totalorder %s15, 1
    %p131 = por %p129, %p130
    %p132 = scmp.ne.s32.totalorder %s121, %s122
    %p133 = scmp.eq.s32.totalorder %s15, 0
    %p134 = por %p132, %p133
    %p135 = scmp.ne.s32.totalorder %s121, %s122
    %p136 = scmp.eq.s32.totalorder %s16, 1
    %p137 = por %p135, %p136
    %p139 = scmp.ne.s32.totalorder %s122, %s138
    %p140 = scmp.eq.s32.totalorder %s16, 0
    %p141 = por %p139, %p140
    %p142 = scmp.le.s32.totalorder 1, %s10
    %p143 = scmp.lt.s32.totalorder %s10, 3
    %p144 = pnand %p142, %p143
    %p145 = pneg %p144
    // Predicated region
    $region9: #{dice_loss_normal2.1} parent=5 // pred_check
      _
    $region10: #{dice_loss_normal2.1} parent=5 // pred_check_branch
      %147 = sbr.rel (%p144) target = $region12
    $region11: #{dice_loss_normal2.1} parent=5 // pred_region
      %s148 = ssub.s32 %s10, 1
    $region12: #{dice_loss_normal2.1} parent=5 // pred_fallthru
      _
    %p149 = scmp.lt.s32.totalorder %s10, 2
    // Predicated region
    $region13: #{dice_loss_normal2.1} parent=5 // pred_check
      %p150 = pneg %p149
    $region14: #{dice_loss_normal2.1} parent=5 // pred_check_branch
      %152 = sbr.rel (%p150) target = $region16
    $region15: #{dice_loss_normal2.1} parent=5 // pred_region
      // Predicated region
      $region17: #{dice_loss_normal2.1} parent=15 // pred_check
        %p153 = pneg %p44
      $region18: #{dice_loss_normal2.1} parent=15 // pred_check_branch
        %155 = sbr.rel (%p153) target = $region20
      $region19: #{dice_loss_normal2.1} parent=15 // pred_region
        %p156 = scmp.lt.s32.totalorder %s17, 1
        %s157 = scalar_select %p156, %s17, 1
        %p158 = scmp.lt.s32.totalorder %s18, 0
        %s159 = scalar_select %p158, %s18, 0
        %s160 = sadd.s32 %s159, %s157
        %s161 = smul.addr %s160, 8
        %s162 = scalar_lea.vmem %s0, %s161
      $region20: #{dice_loss_normal2.1} parent=15 // pred_fallthru
        _
      // Predicated region
      $region21: #{dice_loss_normal2.1} parent=15 // pred_check
        %p163 = pneg %p72
      $region22: #{dice_loss_normal2.1} parent=15 // pred_check_branch
        %165 = sbr.rel (%p163) target = $region24
      $region23: #{dice_loss_normal2.1} parent=15 // pred_region
        %p166 = scmp.lt.s32.totalorder %s17, 1
        %s167 = scalar_select %p166, %s17, 1
        %p168 = scmp.lt.s32.totalorder %s18, 0
        %s169 = scalar_select %p168, %s18, 0
        %s170 = sadd.s32 %s169, %s167
        %s171 = smul.addr %s170, 8
        %s172 = scalar_lea.vmem %s1, %s171
      $region24: #{dice_loss_normal2.1} parent=15 // pred_fallthru
        _
    $region16: #{dice_loss_normal2.1} parent=5 // pred_fallthru
      _
    %p173 = scmp.le.s32.totalorder 1, %s10
    %p174 = scmp.lt.s32.totalorder %s10, 3
    %p175 = pnand %p173, %p174
    %p176 = pneg %p175
    // Predicated region
    $region25: #{dice_loss_normal2.1} parent=5 // pred_check
      _
    $region26: #{dice_loss_normal2.1} parent=5 // pred_check_branch
      %178 = sbr.rel (%p175) target = $region28
    $region27: #{dice_loss_normal2.1} parent=5 // pred_region
      %s179 = ssub.s32 %s10, 1
      %p180 = scmp.lt.s32.totalorder %s19, 1
      %s181 = scalar_select %p180, %s19, 1
      %p182 = scmp.lt.s32.totalorder %s20, 0
      %s183 = scalar_select %p182, %s20, 0
      %s184 = sadd.s32 %s183, %s181
      %s185 = smul.addr %s184, 8
      %s186 = scalar_lea.vmem %s0, %s185
      %p187 = pneg %p50
      %p188 = pneg %p47
      %p189 = scmp.lt.s32.totalorder %s19, 1
      %s190 = scalar_select %p189, %s19, 1
      %p191 = scmp.lt.s32.totalorder %s20, 0
      %s192 = scalar_select %p191, %s20, 0
      %s193 = sadd.s32 %s192, %s190
      %s194 = smul.addr %s193, 8
      %s195 = scalar_lea.vmem %s1, %s194
      %p196 = pneg %p78
      %p197 = pneg %p75
      %p198 = pneg %p106
      %p199 = pneg %p103
      %s200 = sadd.s32 %s19, %s20
      %p201 = scmp.lt.s32.totalorder %s200, 1
      %s202 = scalar_select %p201, %s200, 1
      %s203 = smul.addr %s202, 8
      %s204 = scalar_lea.vmem %s2, %s203
      %p205 = pneg %p134
      %p206 = pneg %p131
      %s207 = sadd.s32 %s19, %s20
      %p208 = scmp.lt.s32.totalorder %s207, 1
      %s209 = scalar_select %p208, %s207, 1
      %s210 = smul.addr %s209, 8
      %s211 = scalar_lea.vmem %s3, %s210
      %p212 = scmp.lt.s32.totalorder %s19, 1
      %s213 = scalar_select %p212, %s19, 1
      %p214 = scmp.lt.s32.totalorder %s20, 0
      %s215 = scalar_select %p214, %s20, 0
      %s216 = sadd.s32 %s215, %s213
      %s217 = smul.addr %s216, 8
      %s218 = scalar_lea.vmem %s0, %s217
      %p219 = scmp.lt.s32.totalorder %s19, 1
      %s220 = scalar_select %p219, %s19, 1
      %p221 = scmp.lt.s32.totalorder %s20, 0
      %s222 = scalar_select %p221, %s20, 0
      %s223 = sadd.s32 %s222, %s220
      %s224 = smul.addr %s223, 8
      %s225 = scalar_lea.vmem %s1, %s224
      %s226 = sadd.s32 %s19, %s20
      %p227 = scmp.lt.s32.totalorder %s226, 1
      %s228 = scalar_select %p227, %s226, 1
      %s229 = smul.addr %s228, 8
      %s230 = scalar_lea.vmem %s2, %s229
      %s231 = sadd.s32 %s19, %s20
      %s232 = sadd.s32 %s19, %s20
      %p233 = scmp.lt.s32.totalorder %s232, 1
      %s234 = scalar_select %p233, %s232, 1
      %s235 = smul.addr %s234, 8
      %s236 = scalar_lea.vmem %s3, %s235
      %s237 = sadd.s32 %s19, %s20
      %v238 = vld [vmem:[%s218] sm:$0x3f]
      %v239 = vld [vmem:[%s225] sm:$0x3f]
      %v240 = vmul.f32 %v238, %v239
      %v241 = vadd.f32 %v238, %v239
      %242 = vst [vmem:[%s230] sm:$0x3f] %v240
      %243 = vst [vmem:[%s236] sm:$0x3f] %v241
      %s244 = sadd.s32 %s19, %s20
      %p245 = scmp.lt.s32.totalorder %s244, 1
      %s246 = scalar_select %p245, %s244, 1
      %s247 = smul.addr %s246, 8
      %s248 = scalar_lea.vmem %s2, %s247
      %s249 = sadd.s32 %s19, %s20
      %p250 = scmp.lt.s32.totalorder %s249, 1
      %s251 = scalar_select %p250, %s249, 1
      %s252 = smul.addr %s251, 8
      %s253 = scalar_lea.vmem %s3, %s252
      // Predicated region
      $region29: #{dice_loss_normal2.1} parent=27 // pred_check
        %p254 = pneg %p103
      $region30: #{dice_loss_normal2.1} parent=27 // pred_check_branch
        %256 = sbr.rel (%p254) target = $region32
      $region31: #{dice_loss_normal2.1} parent=27 // pred_region
        %s257 = sadd.s32 %s19, %s20
      $region32: #{dice_loss_normal2.1} parent=27 // pred_fallthru
        _
      // Predicated region
      $region33: #{dice_loss_normal2.1} parent=27 // pred_check
        %p258 = pneg %p131
      $region34: #{dice_loss_normal2.1} parent=27 // pred_check_branch
        %260 = sbr.rel (%p258) target = $region36
      $region35: #{dice_loss_normal2.1} parent=27 // pred_region
        %s261 = sadd.s32 %s19, %s20
      $region36: #{dice_loss_normal2.1} parent=27 // pred_fallthru
        _
    $region28: #{dice_loss_normal2.1} parent=5 // pred_fallthru
      _
    %p262 = scmp.le.s32.totalorder 2, %s10
    // Predicated region
    $region37: #{dice_loss_normal2.1} parent=5 // pred_check
      %p263 = pneg %p262
    $region38: #{dice_loss_normal2.1} parent=5 // pred_check_branch
      %265 = sbr.rel (%p263) target = $region40
    $region39: #{dice_loss_normal2.1} parent=5 // pred_region
      %s266 = ssub.s32 %s10, 2
      // Predicated region
      $region41: #{dice_loss_normal2.1} parent=39 // pred_check
        %p267 = pneg %p109
      $region42: #{dice_loss_normal2.1} parent=39 // pred_check_branch
        %269 = sbr.rel (%p267) target = $region44
      $region43: #{dice_loss_normal2.1} parent=39 // pred_region
        %s270 = sadd.s32 %s21, %s22
        %p271 = scmp.lt.s32.totalorder %s270, 1
        %s272 = scalar_select %p271, %s270, 1
        %s273 = smul.addr %s272, 8
        %s274 = scalar_lea.vmem %s2, %s273
      $region44: #{dice_loss_normal2.1} parent=39 // pred_fallthru
        _
      // Predicated region
      $region45: #{dice_loss_normal2.1} parent=39 // pred_check
        %p275 = pneg %p137
      $region46: #{dice_loss_normal2.1} parent=39 // pred_check_branch
        %277 = sbr.rel (%p275) target = $region48
      $region47: #{dice_loss_normal2.1} parent=39 // pred_region
        %s278 = sadd.s32 %s21, %s22
        %p279 = scmp.lt.s32.totalorder %s278, 1
        %s280 = scalar_select %p279, %s278, 1
        %s281 = smul.addr %s280, 8
        %s282 = scalar_lea.vmem %s3, %s281
      $region48: #{dice_loss_normal2.1} parent=39 // pred_fallthru
        _
    $region40: #{dice_loss_normal2.1} parent=5 // pred_fallthru
      _
  $region6: #{dice_loss_normal2.1} parent=0 // loop_footer
    %s14 = sadd.s32 1, %s10
  $region7: #{dice_loss_normal2.1} parent=0 // loop_footer_branch
    %9 = sbr.rel target = $region3
  $region8: #{dice_loss_normal2.1} parent=0 // loop_exit
    _

</llo_original>
